<compile_context>
chip_gen: v6e
topology: v6e:2x2x1
jax: 0.10.0
libtpu: 0.0.40
codegen_flags: <defaults>
</compile_context>

<pallas_src>
import jax
import jax.numpy as jnp
from jax.experimental import pallas as pl
from jax.experimental.pallas import tpu as pltpu

_LANE = 128
_SUBLANE = 8


def _largest_aligned_divisor(dim, cap, align):
    """Largest t <= cap with dim % t == 0 and t % align == 0, else None."""
    cap = min(cap, dim)
    t = (cap // align) * align
    while t >= align:
        if dim % t == 0:
            return t
        t -= align
    return None


def _mlp_layer_kernel(x_ref, w_ref, b_ref, o_ref):
    # x_ref: (tm, K)  w_ref: (K, tn) bf16  b_ref: (1, tn) f32  o_ref: (tm, tn)
    x = x_ref[...]
    if x.dtype != jnp.bfloat16:          # static at trace time; no-op for bf16 inputs
        x = x.astype(jnp.bfloat16)
    # Full-K, MXU-native contraction; f32 accumulation.
    acc = jnp.dot(x, w_ref[...], preferred_element_type=jnp.float32)
    # Bias-add (VPU) + tanh (EUP) fused in the f32 epilogue, then cast out.
    o_ref[...] = jnp.tanh(acc + b_ref[...]).astype(o_ref.dtype)


def prepare_mlp_params(weight, bias):
    """One-time parameter prep (call at init, NOT per forward).

    weight: (H_out, H_in) PyTorch nn.Linear layout -> (H_in, H_out) bf16 in HBM.
    bias:   (H_out,) -> (1, H_out) f32 row (kept f32 for the f32 epilogue).
    """
    w_t = jnp.asarray(jnp.transpose(jnp.asarray(weight)), dtype=jnp.bfloat16)
    b2 = jnp.asarray(bias, dtype=jnp.float32).reshape(1, -1)
    return w_t, b2


def mlp_layer(features, w_t, b2, *, vmem_budget_bytes=24 << 20):
    """features: (B, H_in); w_t: (H_in, H_out) bf16 from prepare_mlp_params; b2: (1, H_out) f32."""
    B, H_in = features.shape
    H_in_w, H_out = w_t.shape
    assert H_in_w == H_in
    assert b2.shape == (1, H_out)

    x_bytes = features.dtype.itemsize
    out_dtype = features.dtype
    out_bytes = jnp.dtype(out_dtype).itemsize

    # ---- N tile: lane-dense (multiple of 128) up to 512, else full dim. ----
    if H_out <= 512:
        tn = H_out
    else:
        tn = _largest_aligned_divisor(H_out, 512, _LANE) or H_out

    # ---- M tile: as large as fits the double-buffered VMEM budget (sized for v7x). ----
    w_db = 2 * H_in * tn * 2            # bf16 weight tile, 2 buffers
    b_db = 2 * tn * 4
    per_row = H_in * x_bytes + tn * out_bytes
    max_rows = max((vmem_budget_bytes - w_db - b_db) // (2 * per_row), 1)
    if max_rows >= B:
        tm = B
    else:
        tm = _largest_aligned_divisor(B, max_rows, _SUBLANE) or B

    # ---- v7x megacore: keep >=2 blocks on a parallel axis when possible. ----
    if (B // tm) == 1 and (H_out // tn) == 1:
        split_n = _largest_aligned_divisor(H_out, H_out // 2, _LANE)
        if split_n is not None:
            tn = split_n                # splitting N keeps the weight streamed exactly once
        elif B % (2 * _SUBLANE) == 0:
            tm = B // 2

    num_m = B // tm
    num_n = H_out // tn

    # Grid: N outermost, M innermost -> the (H_in, tn) weight tile stays resident across
    # the inner M sweep, so the full weight streams from HBM exactly once; the (small)
    # activation stream is re-fetched num_n times instead.
    grid = (num_n, num_m)

    vmem_need = 2 * (tm * H_in * x_bytes + H_in * tn * 2 + tn * 4 + tm * tn * out_bytes)
    vmem_limit = int(min(max(vmem_need + (4 << 20), 16 << 20), 48 << 20))

    cost = pl.CostEstimate(
        flops=2 * B * H_in * H_out,
        transcendentals=B * H_out,
        bytes_accessed=(B * H_in * x_bytes * num_n   # x re-streamed once per N block
                        + H_in * H_out * 2           # bf16 weight, single pass
                        + H_out * 4                  # bias
                        + B * H_out * out_bytes),    # output writeback
    )

    return pl.pallas_call(
        _mlp_layer_kernel,
        out_shape=jax.ShapeDtypeStruct((B, H_out), out_dtype),
        grid_spec=pltpu.PrefetchScalarGridSpec(
            num_scalar_prefetch=0,
            grid=grid,
            in_specs=[
                pl.BlockSpec((tm, H_in), lambda j, i: (i, 0)),   # x rows, full K
                pl.BlockSpec((H_in, tn), lambda j, i: (0, j)),   # W^T cols (bf16), full K
                pl.BlockSpec((1, tn), lambda j, i: (0, j)),      # bias row tile
            ],
            out_specs=pl.BlockSpec((tm, tn), lambda j, i: (i, j)),
        ),
        compiler_params=pltpu.CompilerParams(
            dimension_semantics=("parallel", "parallel"),
            vmem_limit_bytes=vmem_limit,
        ),
        cost_estimate=cost,
    )(features, w_t, b2)


def mlp_layer_ref(features, weight, bias):
    return jnp.tanh(features @ weight.T + bias)


if __name__ == "__main__":
    key = jax.random.PRNGKey(0)
    k_x, k_w, k_b = jax.random.split(key, 3)

    batch = 8
    hidden = 32  # config.hidden_size (toy size; real SimCSE uses 768/1024)

    x = jax.random.normal(k_x, (batch, hidden), dtype=jnp.float32)
    # deterministic nn.Linear-style init (uniform in +/- 1/sqrt(fan_in))
    bound = 1.0 / (hidden ** 0.5)
    w = jax.random.uniform(k_w, (hidden, hidden), dtype=jnp.float32,
                           minval=-bound, maxval=bound)
    b = jax.random.uniform(k_b, (hidden,), dtype=jnp.float32,
                           minval=-bound, maxval=bound)

    w_t, b2 = prepare_mlp_params(w, b)   # one-time: bf16 + MXU-native transpose
    y = mlp_layer(x, w_t, b2)
    y = jax.block_until_ready(y)

    y_ref = mlp_layer_ref(x, w, b)
    assert y.shape == (batch, hidden)
    # bf16 matmul operands (f32 accumulation) -> loosened tolerance vs f32 ref.
    assert jnp.allclose(y, y_ref, atol=2e-2, rtol=2e-2), "mismatch vs reference"

    print("KERNEL_OK")
</pallas_src>

<mosaic_0001>
module attributes {stable_mosaic.version = 11 : i64} {
  func.func @_mlp_layer_kernel(%arg0: i32, %arg1: i32, %arg2: memref<8x32xf32, #tpu.memory_space<vmem>>, %arg3: memref<32x32xbf16, #tpu.memory_space<vmem>>, %arg4: memref<1x32xf32, #tpu.memory_space<vmem>>, %arg5: memref<8x32xf32, #tpu.memory_space<vmem>>) attributes {dimension_semantics = [#tpu.dimension_semantics<parallel>, #tpu.dimension_semantics<parallel>], iteration_bounds = array<i64: 1, 1>, scalar_prefetch = 0 : i64, scratch_operands = 0 : i64, tpu.core_type = #tpu.core_type<tc>, window_params = [{transform_indices = @transform_0, window_bounds = array<i64: 8, 32>}, {transform_indices = @transform_1, window_bounds = array<i64: 32, 32>}, {transform_indices = @transform_2, window_bounds = array<i64: 1, 32>}, {transform_indices = @transform_3, window_bounds = array<i64: 8, 32>}]} {
    %c0 = arith.constant 0 : index
    %c0_0 = arith.constant 0 : index
    %0 = vector.load %arg2[%c0, %c0_0] : memref<8x32xf32, #tpu.memory_space<vmem>>, vector<8x32xf32>
    %1 = arith.truncf %0 : vector<8x32xf32> to vector<8x32xbf16>
    %c0_1 = arith.constant 0 : index
    %c0_2 = arith.constant 0 : index
    %2 = vector.load %arg3[%c0_1, %c0_2] : memref<32x32xbf16, #tpu.memory_space<vmem>>, vector<32x32xbf16>
    %cst = arith.constant dense<0.000000e+00> : vector<8x32xf32>
    %3 = tpu.matmul %1, %2, %cst {dimension_numbers = #tpu.dot_dimension_numbers<[1], [0], [0], [1], [0, 0, 1, 1], [], []>} : vector<8x32xbf16>, vector<32x32xbf16>, vector<8x32xf32> -> vector<8x32xf32>
    %c0_3 = arith.constant 0 : index
    %c0_4 = arith.constant 0 : index
    %4 = vector.load %arg4[%c0_3, %c0_4] : memref<1x32xf32, #tpu.memory_space<vmem>>, vector<1x32xf32>
    %5 = vector.broadcast %4 : vector<1x32xf32> to vector<8x32xf32>
    %6 = arith.addf %3, %5 : vector<8x32xf32>
    %7 = math.tanh %6 : vector<8x32xf32>
    %c0_5 = arith.constant 0 : index
    %c0_6 = arith.constant 0 : index
    %8 = vector.load %arg5[%c0_5, %c0_6] : memref<8x32xf32, #tpu.memory_space<vmem>>, vector<8x32xf32>
    tpu.vector_store %arg5[%c0_5, %c0_6], %7 {strides = array<i32>} : memref<8x32xf32, #tpu.memory_space<vmem>>, vector<8x32xf32>,
    return
  }
  func.func @transform_0(%arg0: i32, %arg1: i32) -> (i32, i32) {
    %c0_i32 = arith.constant 0 : i32
    %c0_i32_0 = arith.constant 0 : i32
    return %arg1, %c0_i32 : i32, i32
  }
  func.func @transform_1(%arg0: i32, %arg1: i32) -> (i32, i32) {
    %c0_i32 = arith.constant 0 : i32
    %c0_i32_0 = arith.constant 0 : i32
    return %c0_i32, %arg0 : i32, i32
  }
  func.func @transform_2(%arg0: i32, %arg1: i32) -> (i32, i32) {
    %c0_i32 = arith.constant 0 : i32
    %c0_i32_0 = arith.constant 0 : i32
    return %c0_i32, %arg0 : i32, i32
  }
  func.func @transform_3(%arg0: i32, %arg1: i32) -> (i32, i32) {
    %c0_i32 = arith.constant 0 : i32
    return %arg1, %arg0 : i32, i32
  }
}

</mosaic_0001>

<llo_original>
// kernel: tpu_custom_call.1
$region0: #{tpu_custom_call.1}
  #allocation0 [shape = 'u32[]', space=smem, size = 0x4, offset = 0x4, fixed_abs, tag = 'smem constant byte address 0x4 - core index']
  #allocation1 [shape = 'u32[144,128]{1,0:T(1,128)}', space=vmem, size = 0x12000, scoped, tag = 'internal scratch']
  %s0 = inlined_call_operand.hbm [shape: f32[8,32], index: 0, kind: input, shape index: {}]
  %s1 = inlined_call_operand.hbm [shape: bf16[32,32], index: 1, kind: input, shape index: {}]
  %s2 = inlined_call_operand.vmem [shape: f32[1,32], index: 2, kind: input, shape index: {}]
  %s3 = inlined_call_operand.hbm [shape: f32[8,32], index: 3, kind: output, shape index: {}]
  %s4 = sld [smem:[#allocation0]]
  $region30: #{tpu_custom_call.1} parent=0
    _
  %s6 = ssub.s32 1, %s4
  %s7 = scalar_select 0, %s6, %s4
  $region1: #{tpu_custom_call.1} parent=0
    #allocation2 [shape = 'u8[4096]{0}', space=vmem, size = 0x1000, scoped, tag = 'input window, operand 0, single buffered']
    #allocation3 [shape = 's32[1]{0}', space=sflag, size = 0x4, scoped, tag = 'scoped memory for tpu_custom_call.1']
    #allocation4 [shape = 's32[1]{0}', space=sflag, size = 0x4, scoped, tag = 'scoped memory for tpu_custom_call.1']
    #allocation5 [shape = 'u8[8192]{0}', space=vmem, size = 0x2000, scoped, tag = 'input window, operand 1, single buffered']
    #allocation6 [shape = 's32[1]{0}', space=sflag, size = 0x4, scoped, tag = 'scoped memory for tpu_custom_call.1']
    #allocation7 [shape = 'u8[4096]{0}', space=vmem, size = 0x1000, scoped, tag = 'output window, operand 0, single buffered']
    %8 = vsyncpa [#allocation3], 0
    %9 = vsyncpa [#allocation6], 0
    %10 = vsyncpa [#allocation4], 0
    // Predicated region
    $region2: #{tpu_custom_call.1} parent=1 // pred_check
      _
    $region3: #{tpu_custom_call.1} parent=1 // pred_check_branch
      %12 = sbr.rel (0) target = $region5
    $region4: #{tpu_custom_call.1} parent=1 // pred_region
      %s14 = ssub.s32 128, 128
      %15 = vsyncadd [#allocation3], %s14
      %s17 = sshll.u32 [#allocation2], 4
      %s18 = int_to_ptr.vmem [resolvable:$true] %s17
      %20 = dma.hbm_to_vmem [thread:$0]  %s0, 128, %s18, [#allocation3]
    $region5: #{tpu_custom_call.1} parent=1 // pred_fallthru
      _
    // Predicated region
    $region6: #{tpu_custom_call.1} parent=1 // pred_check
      _
    $region7: #{tpu_custom_call.1} parent=1 // pred_check_branch
      %22 = sbr.rel (0) target = $region9
    $region8: #{tpu_custom_call.1} parent=1 // pred_region
      %s24 = ssub.s32 256, 256
      %25 = vsyncadd [#allocation6], %s24
      %s26 = sshll.u32 [#allocation5], 4
      %s27 = int_to_ptr.vmem [resolvable:$true] %s26
      %32 = dma.hbm_to_vmem [thread:$0]  %s1, 256, %s27, [#allocation6], 64, 64, 4
    $region9: #{tpu_custom_call.1} parent=1 // pred_fallthru
      _
    // Predicated region
    $region10: #{tpu_custom_call.1} parent=1 // pred_check
      _
    $region11: #{tpu_custom_call.1} parent=1 // pred_check_branch
      %34 = sbr.rel (0) target = $region13
    $region12: #{tpu_custom_call.1} parent=1 // pred_region
      _
    $region13: #{tpu_custom_call.1} parent=1 // pred_fallthru
      _
    // Predicated region
    $region14: #{tpu_custom_call.1} parent=1 // pred_check
      _
    $region15: #{tpu_custom_call.1} parent=1 // pred_check_branch
      %36 = sbr.rel (0) target = $region17
    $region16: #{tpu_custom_call.1} parent=1 // pred_region
      %37 = dma.done [#allocation3], 128
    $region17: #{tpu_custom_call.1} parent=1 // pred_fallthru
      _
    // Predicated region
    $region18: #{tpu_custom_call.1} parent=1 // pred_check
      _
    $region19: #{tpu_custom_call.1} parent=1 // pred_check_branch
      %39 = sbr.rel (0) target = $region21
    $region20: #{tpu_custom_call.1} parent=1 // pred_region
      %40 = dma.done [#allocation6], 256
    $region21: #{tpu_custom_call.1} parent=1 // pred_fallthru
      _
    %v42 = vld [vmem:[#allocation2] sm:$0xff]
    %v43 = vpack.c.bf16 %v42, %v42
    %v44 = vld [vmem:[#allocation5] sm:$0xf]
    %v45 = vld [vmem:[#allocation5 + $0x4] sm:$0xf]
    %v46 = vld [vmem:[#allocation5 + $0x8] sm:$0xf]
    %v47 = vld [vmem:[#allocation5 + $0xc] sm:$0xf]
    %v48 = vld [vmem:[%s2] sm:$0x1]
    %v50 = vlaneseq
    %v51 = vshrl.u32 %v50, 7
    %v52 = vsub.s32 0, %v51
    %v53 = vrot.slane %v48, %v52
    %v59 = vunpack.c.l.b16 %v44
    %v60 = vunpack.c.l.b16 %v45
    %v61 = vunpack.c.l.b16 %v46
    %v62 = vunpack.c.l.b16 %v47
    %v63 = vpack.c.b16 %v60, %v59
    %v64 = vpack.c.b16 %v62, %v61
    %vm67 = vcmask 261120
    %v69 = vsel %vm67, %v43, 0
    %71 = vmatprep.subr.bf16.mxu0 0
    %72 = vmatpush1.bf16.msra.mxu0 0
    %73 = vmatprep.subr.bf16.mxu0 0
    %74 = vmatpush1.bf16.msra.mxu0 0
    %75 = vmatprep.subr.bf16.mxu0 0
    %76 = vmatpush1.bf16.msra.mxu0 0
    %77 = vmatprep.subr.bf16.mxu0 0
    %78 = vmatpush1.bf16.msra.mxu0 0
    %79 = vmatprep.subr.bf16.mxu0 0
    %80 = vmatpush1.bf16.msra.mxu0 0
    %81 = vmatprep.subr.bf16.mxu0 0
    %82 = vmatpush1.bf16.msra.mxu0 0
    %83 = vmatprep.subr.bf16.mxu0 0
    %84 = vmatpush1.bf16.msra.mxu0 %v64
    %85 = vmatprep.subr.bf16.mxu0 0
    %86 = vmatpush1.bf16.msra.mxu0 %v63
    %87 = vmatprep.subr.bf16.mxu0 0
    %88 = vmatpush2.bf16.msra.mxu0 0
    %89 = vmatprep.subr.bf16.mxu0 0
    %90 = vmatpush2.bf16.msra.mxu0 0
    %91 = vmatprep.subr.bf16.mxu0 0
    %92 = vmatpush2.bf16.msra.mxu0 0
    %93 = vmatprep.subr.bf16.mxu0 0
    %94 = vmatpush2.bf16.msra.mxu0 0
    %95 = vmatprep.subr.bf16.mxu0 0
    %96 = vmatpush2.bf16.msra.mxu0 0
    %97 = vmatprep.subr.bf16.mxu0 0
    %98 = vmatpush2.bf16.msra.mxu0 0
    %99 = vmatprep.subr.bf16.mxu0 0
    %100 = vmatpush2.bf16.msra.mxu0 0
    %101 = vmatprep.subr.bf16.mxu0 0
    %102 = vmatpush2.bf16.msra.mxu0 0
    %103 = vmatprep.mubr.bf16.mxu0 0
    %104 = vmatmul.mubr.bf16.gmra.mxu0 %v69
    %v105 = vpop.f32.mrf.mxu0
    %v106 = vadd.f32 %v53, %v105
    %v107 = vpop.f32.mrf.mxu0
    %v108 = vpop.f32.mrf.mxu0
    %v109 = vpop.f32.mrf.mxu0
    %110 = vdwg.mxu0
    %v111 = vtanh.pop %v106
    %112 = vst.msk [vmem:[#allocation7] sm:$0xff] %vm67, %v111
    // Predicated region
    $region22: #{tpu_custom_call.1} parent=1 // pred_check
      _
    $region23: #{tpu_custom_call.1} parent=1 // pred_check_branch
      %114 = sbr.rel (0) target = $region25
    $region24: #{tpu_custom_call.1} parent=1 // pred_region
      %s116 = ssub.s32 128, 128
      %117 = vsyncadd [#allocation4], %s116
      %s119 = sshll.u32 [#allocation7], 4
      %s120 = int_to_ptr.vmem [resolvable:$true] %s119
      %122 = dma.vmem_to_hbm [thread:$0]  %s120, 128, %s3, [#allocation4]
    $region25: #{tpu_custom_call.1} parent=1 // pred_fallthru
      _
    // Predicated region
    $region26: #{tpu_custom_call.1} parent=1 // pred_check
      _
    $region27: #{tpu_custom_call.1} parent=1 // pred_check_branch
      %124 = sbr.rel (0) target = $region29
    $region28: #{tpu_custom_call.1} parent=1 // pred_region
      %125 = dma.done [#allocation4], 128
    $region29: #{tpu_custom_call.1} parent=1 // pred_fallthru
      _
    %126 = vsyncpa [#allocation3], 1
    %127 = vsyncpa [#allocation6], 1
    %128 = vsyncpa [#allocation4], 1

</llo_original>
